<compile_context>
chip_gen: v7x
topology: tpu7x:2x2x1
jax: 0.10.0
libtpu: 0.0.40
codegen_flags: <defaults>
</compile_context>

<pallas_src>
import jax
import jax.numpy as jnp
from jax.experimental import pallas as pl
from jax.experimental.pallas import tpu as pltpu


def _eca_kernel(band_ref, x_ref, o_ref):
    # band_ref : VMEM (C, C) f32   -- banded 1D-conv matrix, VMEM-resident
    # x_ref    : VMEM (TB, C, HW)  -- TB batch elements (input dtype)
    # o_ref    : VMEM (TB, C, HW)
    x = x_ref[...]                                     # (TB, C, HW), input dtype
    hw = x.shape[2]

    # ---- global average pool over the spatial (lane) axis, f32 accumulation ----
    y = jnp.sum(x, axis=2, dtype=jnp.float32) * (1.0 / hw)        # (TB, C) f32

    # ---- 3-tap channel conv: z = y @ band  (band built once in the wrapper) ----
    z = jnp.dot(y, band_ref[...], preferred_element_type=jnp.float32)  # (TB, C)

    # ---- sigmoid gate, scale in the input dtype (no full-slab f32 cast) ----
    s = jax.nn.sigmoid(z).astype(x.dtype)              # (TB, C)
    o_ref[...] = x * s[:, :, None]


def _band_matrix(conv_weight, C):
    """(C, C) matrix M with M[j, c] = coeff of y[j] in z[c] for the zero-padded
    1D cross-correlation z[c] = sum_t w[t] * y[c + t - pad]  (PyTorch Conv1d)."""
    k = conv_weight.shape[0]
    pad = (k - 1) // 2
    j = jnp.arange(C, dtype=jnp.int32)[:, None]
    c = jnp.arange(C, dtype=jnp.int32)[None, :]
    band = jnp.zeros((C, C), jnp.float32)
    for t in range(k):
        band = band + jnp.where(j == c + (t - pad),
                                conv_weight[t].astype(jnp.float32),
                                jnp.float32(0.0))
    return band


def _choose_tb(B, per_batch_bytes, target_bytes=2 << 20):
    """Fold batches so a block is ~target_bytes, keep >=2 grid steps, divide B."""
    tb = max(1, min(B, target_bytes // max(per_batch_bytes, 1)))
    if B >= 2:
        tb = min(tb, max(1, B // 2))   # keep >= 2 parallel steps (megacore / v7x)
    tb = int(tb)
    while B % tb:
        tb -= 1
    return tb


def eca_attention(x_nchw, conv_weight):
    """x_nchw: (B, C, H, W); conv_weight: (k,) float32 (Conv1d(1,1,k) weights)."""
    B, C, H, W = x_nchw.shape
    HW = H * W
    x3 = x_nchw.reshape(B, C, HW)
    band = _band_matrix(conv_weight, C)

    itemsize = int(jnp.dtype(x_nchw.dtype).itemsize)
    per_batch_bytes = C * HW * itemsize
    tb = _choose_tb(B, per_batch_bytes)
    grid = (B // tb,)

    # VMEM budget: double-buffered input + output blocks + resident band + slack.
    block_bytes = tb * per_batch_bytes
    required = 4 * block_bytes + C * C * 4 + (1 << 20)
    cp_kwargs = dict(dimension_semantics=("parallel",))
    if required > (16 << 20):
        cp_kwargs["vmem_limit_bytes"] = int(min(required, 56 << 20))
    # TODO(synk): if a single (1, C, HW) slab ever exceeds the VMEM budget
    # (huge C*HW on v7x/v5e), split into a pooled-gate pass + a lane-tiled
    # scale pass instead of this single fused kernel.

    out3 = pl.pallas_call(
        _eca_kernel,
        out_shape=jax.ShapeDtypeStruct((B, C, HW), x_nchw.dtype),
        grid_spec=pltpu.PrefetchScalarGridSpec(
            num_scalar_prefetch=0,
            grid=grid,
            in_specs=[
                pl.BlockSpec((C, C), lambda b: (0, 0)),          # band: resident
                pl.BlockSpec((tb, C, HW), lambda b: (b, 0, 0)),  # x block
            ],
            out_specs=pl.BlockSpec((tb, C, HW), lambda b: (b, 0, 0)),
        ),
        compiler_params=pltpu.CompilerParams(**cp_kwargs),
        cost_estimate=pl.CostEstimate(
            flops=int(2 * B * C * HW + 2 * conv_weight.shape[0] * B * C),
            transcendentals=int(B * C),
            bytes_accessed=int(2 * B * C * HW * itemsize + B * C * 4),
        ),
    )(band, x3)

    return out3.reshape(B, C, H, W)


def _eca_reference(x_nchw, conv_weight):
    """Pure-JAX reference mirroring the PyTorch forward."""
    B, C, H, W = x_nchw.shape
    y = jnp.mean(x_nchw.astype(jnp.float32), axis=(2, 3))           # (B, C)
    ypad = jnp.pad(y, ((0, 0), (1, 1)))                             # (B, C+2)
    z = (conv_weight[0] * ypad[:, 0:C]
         + conv_weight[1] * ypad[:, 1:C + 1]
         + conv_weight[2] * ypad[:, 2:C + 2])                       # (B, C)
    s = jax.nn.sigmoid(z)
    return (x_nchw.astype(jnp.float32) * s[:, :, None, None]).astype(x_nchw.dtype)


if __name__ == "__main__":
    key = jax.random.PRNGKey(0)
    kx, kw = jax.random.split(key)

    B, C, H, W = 2, 4, 16, 16
    x = jax.random.normal(kx, (B, C, H, W), dtype=jnp.float32)

    # Deterministic Conv1d(1, 1, kernel_size=3, bias=False) weight: (1,1,3) -> (3,)
    k_size = 3
    conv_w = (jax.random.normal(kw, (1, 1, k_size), dtype=jnp.float32)
              * (1.0 / jnp.sqrt(k_size))).reshape(k_size)

    out = eca_attention(x, conv_w)
    out = jax.block_until_ready(out)

    ref = _eca_reference(x, conv_w)
    assert jnp.allclose(out, ref, atol=1e-5, rtol=1e-5), "mismatch vs reference"

    print("KERNEL_OK")
</pallas_src>

<mosaic_0001>
module attributes {stable_mosaic.version = 11 : i64} {
  func.func @_eca_kernel(%arg0: i32, %arg1: memref<4x4xf32, #tpu.memory_space<vmem>>, %arg2: memref<1x4x256xf32, #tpu.memory_space<vmem>>, %arg3: memref<1x4x256xf32, #tpu.memory_space<vmem>>) attributes {dimension_semantics = [#tpu.dimension_semantics<parallel>], iteration_bounds = array<i64: 2>, scalar_prefetch = 0 : i64, scratch_operands = 0 : i64, tpu.core_type = #tpu.core_type<tc>, window_params = [{pipeline_mode = #tpu.pipeline_mode<synchronous>, transform_indices = @transform_0, window_bounds = array<i64: 4, 4>}, {transform_indices = @transform_1, window_bounds = array<i64: 1, 4, 256>}, {transform_indices = @transform_2, window_bounds = array<i64: 1, 4, 256>}]} {
    %c0 = arith.constant 0 : index
    %c0_0 = arith.constant 0 : index
    %c0_1 = arith.constant 0 : index
    %0 = vector.load %arg2[%c0, %c0_0, %c0_1] : memref<1x4x256xf32, #tpu.memory_space<vmem>>, vector<1x4x256xf32>
    %cst = arith.constant dense<0.000000e+00> : vector<1x4xf32>
    %1 = vector.multi_reduction <add>, %0, %cst [2] : vector<1x4x256xf32> to vector<1x4xf32>
    %cst_2 = arith.constant 3.906250e-03 : f32
    %2 = vector.broadcast %cst_2 : f32 to vector<1x4xf32>
    %3 = arith.mulf %1, %2 : vector<1x4xf32>
    %c0_3 = arith.constant 0 : index
    %c0_4 = arith.constant 0 : index
    %4 = vector.load %arg1[%c0_3, %c0_4] : memref<4x4xf32, #tpu.memory_space<vmem>>, vector<4x4xf32>
    %cst_5 = arith.constant dense<0.000000e+00> : vector<1x4xf32>
    %5 = tpu.matmul %3, %4, %cst_5 {dimension_numbers = #tpu.dot_dimension_numbers<[1], [0], [0], [1], [0, 0, 1, 1], [], []>} : vector<1x4xf32>, vector<4x4xf32>, vector<1x4xf32> -> vector<1x4xf32>
    %6 = arith.negf %5 : vector<1x4xf32>
    %7 = math.exp %6 : vector<1x4xf32>
    %cst_6 = arith.constant 1.000000e+00 : f32
    %8 = vector.broadcast %cst_6 : f32 to vector<1x4xf32>
    %9 = arith.addf %8, %7 : vector<1x4xf32>
    %10 = arith.divf %8, %9 : vector<1x4xf32>
    %11 = vector.shape_cast %10 : vector<1x4xf32> to vector<1x4x1xf32>
    %12 = vector.broadcast %11 : vector<1x4x1xf32> to vector<1x4x256xf32>
    %13 = arith.mulf %0, %12 : vector<1x4x256xf32>
    %c0_7 = arith.constant 0 : index
    %c0_8 = arith.constant 0 : index
    %c0_9 = arith.constant 0 : index
    %14 = vector.load %arg3[%c0_7, %c0_8, %c0_9] : memref<1x4x256xf32, #tpu.memory_space<vmem>>, vector<1x4x256xf32>
    tpu.vector_store %arg3[%c0_7, %c0_8, %c0_9], %13 {strides = array<i32>} : memref<1x4x256xf32, #tpu.memory_space<vmem>>, vector<1x4x256xf32>,
    return
  }
  func.func @transform_0(%arg0: i32) -> (i32, i32) {
    %c0_i32 = arith.constant 0 : i32
    %c0_i32_0 = arith.constant 0 : i32
    %c0_i32_1 = arith.constant 0 : i32
    return %c0_i32, %c0_i32_0 : i32, i32
  }
  func.func @transform_1(%arg0: i32) -> (i32, i32, i32) {
    %c0_i32 = arith.constant 0 : i32
    %c0_i32_0 = arith.constant 0 : i32
    %c0_i32_1 = arith.constant 0 : i32
    return %arg0, %c0_i32, %c0_i32_0 : i32, i32, i32
  }
  func.func @transform_2(%arg0: i32) -> (i32, i32, i32) {
    %c0_i32 = arith.constant 0 : i32
    %c0_i32_0 = arith.constant 0 : i32
    %c0_i32_1 = arith.constant 0 : i32
    return %arg0, %c0_i32, %c0_i32_0 : i32, i32, i32
  }
}

</mosaic_0001>

<llo_original>
// kernel: tpu_custom_call.1
$region0: #{tpu_custom_call.1}
  #allocation0 [shape = 'u32[]', space=smem, size = 0x4, offset = 0x4, fixed_abs, tag = 'smem constant byte address 0x4 - core index']
  #allocation1 [shape = 'u32[144,128]{1,0:T(1,128)}', space=vmem, size = 0x12000, scoped, tag = 'internal scratch']
  %s0 = inlined_call_operand.hbm [shape: f32[4,4], index: 0, kind: input, shape index: {}]
  %s1 = inlined_call_operand.hbm [shape: f32[2,4,256], index: 1, kind: input, shape index: {}]
  %s2 = inlined_call_operand.hbm [shape: f32[2,4,256], index: 2, kind: output, shape index: {}]
  %s3 = sld [smem:[#allocation0]]
  $region49: #{tpu_custom_call.1} parent=0
    _
  %s5 = ssub.s32 1, %s3
  %s6 = scalar_select 0, %s5, %s3
  $region1: #{tpu_custom_call.1} parent=0
    #allocation2 [shape = 'u8[2048]{0}', space=vmem, size = 0x800, scoped, tag = 'input window, operand 0, single buffered']
    #allocation3 [shape = 's32[2]{0}', space=sflag, size = 0x8, scoped, tag = 'scoped memory for tpu_custom_call.1']
    #allocation4 [shape = 's32[2]{0}', space=sflag, size = 0x8, scoped, tag = 'scoped memory for tpu_custom_call.1']
    #allocation5 [shape = 'u8[8192]{0}', space=vmem, size = 0x2000, scoped, tag = 'input window, operand 1']
    #allocation6 [shape = 's32[2]{0}', space=sflag, size = 0x8, scoped, tag = 'scoped memory for tpu_custom_call.1']
    #allocation7 [shape = 'u8[8192]{0}', space=vmem, size = 0x2000, scoped, tag = 'output window, operand 0']
    %7 = vsyncpa [#allocation3], 0
    %8 = vsyncpa [#allocation6], 0
    %s9 = scalar_lea.sflag [#allocation6], 1
    %10 = vsyncpa %s9, 0
    %11 = vsyncpa [#allocation4], 0
    %s12 = scalar_lea.sflag [#allocation4], 1
    %13 = vsyncpa %s12, 0
    loop: start=0, step=1, limit=4
    $region2: #{tpu_custom_call.1} parent=1 // loop_pre_header
      _
    $region3: #{tpu_custom_call.1} parent=1 // loop_header
      %s15 = sphi 0, %s19
      %p16 = scmp.ge.s32.totalorder %s15, 4
      %s23 = sphi 0, %s23
      %s25 = sphi 0, %s23
      %s26 = sphi 0, %s25
      %s40 = sphi 0, %s26
      %s46 = sphi 0, %s48
      %s49 = sphi 0, %s46
      %s50 = sphi 0, %s49
      %s66 = sphi 0, %s50
      %s72 = sphi 0, %s74
      %s75 = sphi 0, %s72
      %s76 = sphi 0, %s75
      %s92 = sphi 0, %s76
    $region4: #{tpu_custom_call.1} parent=1 // loop_header_branch
      %18 = sbr.rel (%p16) target = $region8
    $region5: #{tpu_custom_call.1} parent=1 // loop_body
      %s20 = ssub.s32 %s15, 1
      %s21 = ssub.s32 %s15, 2
      %s22 = sadd.s32 %s15, 1
      %s24 = sadd.s32 %s23, 1
      %p27 = scmp.eq.s32.totalorder %s15, 1
      %p28 = scmp.ne.s32.totalorder %s23, %s25
      %p29 = scmp.eq.s32.totalorder %s15, 0
      %p30 = por %p28, %p29
      %p31 = scmp.ne.s32.totalorder %s23, %s25
      %p32 = scmp.eq.s32.totalorder %s20, 1
      %p33 = por %p31, %p32
      %p34 = scmp.ne.s32.totalorder %s25, %s26
      %p35 = scmp.eq.s32.totalorder %s20, 0
      %p36 = por %p34, %p35
      %p37 = scmp.ne.s32.totalorder %s25, %s26
      %p38 = scmp.eq.s32.totalorder %s21, 1
      %p39 = por %p37, %p38
      %p41 = scmp.ne.s32.totalorder %s26, %s40
      %p42 = scmp.eq.s32.totalorder %s21, 0
      %p43 = por %p41, %p42
      %s44 = ssub.s32 %s15, %s22
      %p45 = scmp.eq.s32.totalorder %s44, 0
      %s47 = sadd.s32 %s46, 1
      %s48 = scalar_select %p45, %s46, %s47
      %p51 = pneg %p45
      %p52 = scmp.eq.s32.totalorder %s15, 1
      %p53 = por %p51, %p52
      %p54 = scmp.ne.s32.totalorder %s46, %s49
      %p55 = scmp.eq.s32.totalorder %s15, 0
      %p56 = por %p54, %p55
      %p57 = scmp.ne.s32.totalorder %s46, %s49
      %p58 = scmp.eq.s32.totalorder %s20, 1
      %p59 = por %p57, %p58
      %p60 = scmp.ne.s32.totalorder %s49, %s50
      %p61 = scmp.eq.s32.totalorder %s20, 0
      %p62 = por %p60, %p61
      %p63 = scmp.ne.s32.totalorder %s49, %s50
      %p64 = scmp.eq.s32.totalorder %s21, 1
      %p65 = por %p63, %p64
      %p67 = scmp.ne.s32.totalorder %s50, %s66
      %p68 = scmp.eq.s32.totalorder %s21, 0
      %p69 = por %p67, %p68
      %s70 = ssub.s32 %s15, %s22
      %p71 = scmp.eq.s32.totalorder %s70, 0
      %s73 = sadd.s32 %s72, 1
      %s74 = scalar_select %p71, %s72, %s73
      %p77 = pneg %p71
      %p78 = scmp.eq.s32.totalorder %s15, 1
      %p79 = por %p77, %p78
      %p80 = scmp.ne.s32.totalorder %s72, %s75
      %p81 = scmp.eq.s32.totalorder %s15, 0
      %p82 = por %p80, %p81
      %p83 = scmp.ne.s32.totalorder %s72, %s75
      %p84 = scmp.eq.s32.totalorder %s20, 1
      %p85 = por %p83, %p84
      %p86 = scmp.ne.s32.totalorder %s75, %s76
      %p87 = scmp.eq.s32.totalorder %s20, 0
      %p88 = por %p86, %p87
      %p89 = scmp.ne.s32.totalorder %s75, %s76
      %p90 = scmp.eq.s32.totalorder %s21, 1
      %p91 = por %p89, %p90
      %p93 = scmp.ne.s32.totalorder %s76, %s92
      %p94 = scmp.eq.s32.totalorder %s21, 0
      %p95 = por %p93, %p94
      %p96 = scmp.le.s32.totalorder 1, %s15
      %p97 = scmp.lt.s32.totalorder %s15, 3
      %p98 = pnand %p96, %p97
      %p99 = pneg %p98
      // Predicated region
      $region9: #{tpu_custom_call.1} parent=5 // pred_check
        _
      $region10: #{tpu_custom_call.1} parent=5 // pred_check_branch
        %101 = sbr.rel (%p98) target = $region12
      $region11: #{tpu_custom_call.1} parent=5 // pred_region
        %s102 = ssub.s32 %s15, 1
        // Predicated region
        $region13: #{tpu_custom_call.1} parent=11 // pred_check
          %p103 = pneg %p36
        $region14: #{tpu_custom_call.1} parent=11 // pred_check_branch
          %105 = sbr.rel (%p103) target = $region16
        $region15: #{tpu_custom_call.1} parent=11 // pred_region
          %s107 = ssub.s32 64, 64
          %108 = vsyncadd [#allocation3], %s107
          %s110 = sshll.u32 [#allocation2], 4
          %s111 = int_to_ptr.vmem [resolvable:$true] %s110
          %113 = dma.hbm_to_vmem [thread:$0]  %s0, 64, %s111, [#allocation3]
        $region16: #{tpu_custom_call.1} parent=11 // pred_fallthru
          _
      $region12: #{tpu_custom_call.1} parent=5 // pred_fallthru
        _
      %p114 = scmp.lt.s32.totalorder %s15, 2
      // Predicated region
      $region17: #{tpu_custom_call.1} parent=5 // pred_check
        %p115 = pneg %p114
      $region18: #{tpu_custom_call.1} parent=5 // pred_check_branch
        %117 = sbr.rel (%p115) target = $region20
      $region19: #{tpu_custom_call.1} parent=5 // pred_region
        // Predicated region
        $region21: #{tpu_custom_call.1} parent=19 // pred_check
          %p118 = pneg %p56
        $region22: #{tpu_custom_call.1} parent=19 // pred_check_branch
          %120 = sbr.rel (%p118) target = $region24
        $region23: #{tpu_custom_call.1} parent=19 // pred_region
          %s121 = sand.u32 %s46, 1
          %s122 = scalar_lea.sflag [#allocation6], %s121
          %s123 = sand.u32 %s46, 1
          %s124 = smul.addr %s123, 8
          %s125 = scalar_lea.vmem [#allocation5], %s124
          %s127 = ssub.s32 128, 128
          %128 = vsyncadd %s122, %s127
          %s129 = smul.addr %s15, 2
          %s130 = smul.addr %s129, 64
          %s131 = scalar_lea.hbm %s1, %s130
          %s133 = sshll.u32 %s125, 4
          %s134 = int_to_ptr.vmem [resolvable:$true] %s133
          %136 = dma.hbm_to_vmem [thread:$0]  %s131, 128, %s134, %s122
        $region24: #{tpu_custom_call.1} parent=19 // pred_fallthru
          _
      $region20: #{tpu_custom_call.1} parent=5 // pred_fallthru
        _
      %p137 = scmp.le.s32.totalorder 1, %s15
      %p138 = scmp.lt.s32.totalorder %s15, 3
      %p139 = pnand %p137, %p138
      %p140 = pneg %p139
      // Predicated region
      $region25: #{tpu_custom_call.1} parent=5 // pred_check
        _
      $region26: #{tpu_custom_call.1} parent=5 // pred_check_branch
        %142 = sbr.rel (%p139) target = $region28
      $region27: #{tpu_custom_call.1} parent=5 // pred_region
        %s143 = ssub.s32 %s15, 1
        // Predicated region
        $region29: #{tpu_custom_call.1} parent=27 // pred_check
          %p144 = pneg %p36
        $region30: #{tpu_custom_call.1} parent=27 // pred_check_branch
          %146 = sbr.rel (%p144) target = $region32
        $region31: #{tpu_custom_call.1} parent=27 // pred_region
          %147 = dma.done [#allocation3], 64
        $region32: #{tpu_custom_call.1} parent=27 // pred_fallthru
          _
        %s148 = sand.u32 %s49, 1
        %s149 = scalar_lea.sflag [#allocation6], %s148
        %s150 = sand.u32 %s49, 1
        %s151 = smul.addr %s150, 8
        %s152 = scalar_lea.vmem [#allocation5], %s151
        // Predicated region
        $region33: #{tpu_custom_call.1} parent=27 // pred_check
          %p153 = pneg %p62
        $region34: #{tpu_custom_call.1} parent=27 // pred_check_branch
          %155 = sbr.rel (%p153) target = $region36
        $region35: #{tpu_custom_call.1} parent=27 // pred_region
          %156 = dma.done %s149, 128
        $region36: #{tpu_custom_call.1} parent=27 // pred_fallthru
          _
        %p157 = pneg %p36
        %p158 = pneg %p33
        %s159 = sand.u32 %s49, 1
        %s160 = scalar_lea.sflag [#allocation6], %s159
        %s161 = sand.u32 %s49, 1
        %s162 = smul.addr %s161, 8
        %s163 = scalar_lea.vmem [#allocation5], %s162
        %p164 = pneg %p62
        %p165 = pneg %p59
        %p166 = pneg %p88
        %p167 = pneg %p85
        %s168 = sand.u32 %s75, 1
        %s169 = scalar_lea.sflag [#allocation4], %s168
        %s170 = sand.u32 %s75, 1
        %s171 = smul.addr %s170, 8
        %s172 = scalar_lea.vmem [#allocation7], %s171
        %v173 = vld [vmem:[%s152] sm:$0xff]
        %v175 = vcombine.high %v173, %v173
        %vm177 = vcmask 1043456
        %v178 = vsel %vm177, %v173, 0.0
        %v179 = vsel %vm177, %v175, 0.0
        %v180 = vadd.f32 %v178, %v179
        %181 = vadd.xlane.f32.xlu0 %v180
        %v182 = vpop.xlane.xlu0 %181
        %v183 = vmul.f32 %v182, 0.00390625
        %v184 = vld [vmem:[#allocation2] sm:$0xf]
        %v186 = vlaneseq
        %v187 = vand.u32 %v186, 127
        %v188 = vlaneseq
        %v189 = vshrl.u32 %v188, 7
        %v190 = vsub.s32 %v187, %v189
        %v191 = vrot.slane %v183, %v190
        %vm192 = vcmask 31744
        %v193 = vsel %vm192, %v191, 0
        %v196 = vsel %vm177, %v184, 0
        %198 = vmatprep.subr.mxu0 0.0
        %199 = vmatpush1.msra.mxu0 %v196
        %200 = vmatprep.subr.mxu0 0.0
        %201 = vmatpush1.msra.mxu0 0.0
        %202 = vmatprep.subr.mxu0 0.0
        %203 = vmatpush1.msra.mxu0 0.0
        %204 = vmatprep.subr.mxu0 0.0
        %205 = vmatpush1.msra.mxu0 0.0
        %206 = vmatprep.subr.mxu0 0.0
        %207 = vmatpush1.msra.mxu0 0.0
        %208 = vmatprep.subr.mxu0 0.0
        %209 = vmatpush1.msra.mxu0 0.0
        %210 = vmatprep.subr.mxu0 0.0
        %211 = vmatpush1.msra.mxu0 0.0
        %212 = vmatprep.subr.mxu0 0.0
        %213 = vmatpush1.msra.mxu0 0.0
        %214 = vmatprep.subr.mxu0 0.0
        %215 = vmatpush1.msra.mxu0 0.0
        %216 = vmatprep.subr.mxu0 0.0
        %217 = vmatpush1.msra.mxu0 0.0
        %218 = vmatprep.subr.mxu0 0.0
        %219 = vmatpush1.msra.mxu0 0.0
        %220 = vmatprep.subr.mxu0 0.0
        %221 = vmatpush1.msra.mxu0 0.0
        %222 = vmatprep.subr.mxu0 0.0
        %223 = vmatpush1.msra.mxu0 0.0
        %224 = vmatprep.subr.mxu0 0.0
        %225 = vmatpush1.msra.mxu0 0.0
        %226 = vmatprep.subr.mxu0 0.0
        %227 = vmatpush1.msra.mxu0 0.0
        %228 = vmatprep.subr.mxu0 0.0
        %229 = vmatpush1.msra.mxu0 0.0
        %230 = vmatprep.subr.mxu0 0.0
        %231 = vmatpush1.msra.mxu0 0.0
        %232 = vmatprep.subr.mxu0 0.0
        %233 = vmatpush1.msra.mxu0 0.0
        %234 = vmatprep.subr.mxu0 0.0
        %235 = vmatpush1.msra.mxu0 0.0
        %236 = vmatprep.subr.mxu0 0.0
        %237 = vmatpush1.msra.mxu0 0.0
        %238 = vmatprep.subr.mxu0 0.0
        %239 = vmatpush1.msra.mxu0 0.0
        %240 = vmatprep.subr.mxu0 0.0
        %241 = vmatpush1.msra.mxu0 0.0
        %242 = vmatprep.subr.mxu0 0.0
        %243 = vmatpush1.msra.mxu0 0.0
        %244 = vmatprep.subr.mxu0 0.0
        %245 = vmatpush1.msra.mxu0 0.0
        %246 = vmatprep.subr.mxu0 0.0
        %247 = vmatpush1.msra.mxu0 0.0
        %248 = vmatprep.subr.mxu0 0.0
        %249 = vmatpush1.msra.mxu0 0.0
        %250 = vmatprep.subr.mxu0 0.0
        %251 = vmatpush1.msra.mxu0 0.0
        %252 = vmatprep.subr.mxu0 0.0
        %253 = vmatpush1.msra.mxu0 0.0
        %254 = vmatprep.subr.mxu0 0.0
        %255 = vmatpush1.msra.mxu0 0.0
        %256 = vmatprep.subr.mxu0 0.0
        %257 = vmatpush1.msra.mxu0 0.0
        %258 = vmatprep.subr.mxu0 0.0
        %259 = vmatpush1.msra.mxu0 0.0
        %260 = vmatprep.subr.mxu0 0.0
        %261 = vmatpush1.msra.mxu0 0.0
        %262 = vmatprep.mubr.f32.mxu0 0.0
        %263 = vmatmul.mubr.f32.gmra.mrb[0].mxu0 %v193
        %v264 = vpop.f32.mrb[0].mxu0
        %v265 = vadd.f32 0.0, %v264
        %v266 = vpop.f32.mrb[0].mxu0
        %267 = vdwg.mxu0
        %v268 = vxor.u32 %v265, 2147483648
        %v269 = vmul.f32 %v268, 1.442695
        %v270 = vpow.pop %v269
        %v271 = vadd.f32 %v270, 1.0
        %v272 = vrcp.pop %v271
        %v273 = vmul.f32 1.0, %v272
        %v274 = vlaneseq
        %v275 = vshrl.u32 %v274, 7
        %v276 = vsub.s32 0, %v275
        %v277 = vrot.slane %v273, %v276
        %279 = vbcast.lane.b32.xlu0 %v277, 256
        %v280 = vpop.permute.xlu0 %279
        %v283 = vunpack.c.l.s4 839922192
        %v284 = vunpack.c.0.s8 %v283
        %v285 = vlaneseq
        %v286 = vshrl.u32 %v285, 7
        %v287 = vsub.s32 %v284, %v286
        %v288 = vrot.slane %v280, %v287
        %v290 = vmul.f32 %v173, %v288
        %291 = vst [vmem:[%s172] sm:$0xff] %v290
        %s292 = sand.u32 %s75, 1
        %s293 = scalar_lea.sflag [#allocation4], %s292
        %s294 = sand.u32 %s75, 1
        %s295 = smul.addr %s294, 8
        %s296 = scalar_lea.vmem [#allocation7], %s295
        // Predicated region
        $region37: #{tpu_custom_call.1} parent=27 // pred_check
          %p297 = pneg %p85
        $region38: #{tpu_custom_call.1} parent=27 // pred_check_branch
          %299 = sbr.rel (%p297) target = $region40
        $region39: #{tpu_custom_call.1} parent=27 // pred_region
          %s301 = ssub.s32 128, 128
          %302 = vsyncadd %s293, %s301
          %s303 = smul.addr %s20, 2
          %s304 = smul.addr %s303, 64
          %s305 = scalar_lea.hbm %s2, %s304
          %s307 = sshll.u32 %s296, 4
          %s308 = int_to_ptr.vmem [resolvable:$true] %s307
          %310 = dma.vmem_to_hbm [thread:$0]  %s308, 128, %s305, %s293
        $region40: #{tpu_custom_call.1} parent=27 // pred_fallthru
          _
      $region28: #{tpu_custom_call.1} parent=5 // pred_fallthru
        _
      %p311 = scmp.le.s32.totalorder 2, %s15
      // Predicated region
      $region41: #{tpu_custom_call.1} parent=5 // pred_check
        %p312 = pneg %p311
      $region42: #{tpu_custom_call.1} parent=5 // pred_check_branch
        %314 = sbr.rel (%p312) target = $region44
      $region43: #{tpu_custom_call.1} parent=5 // pred_region
        %s315 = ssub.s32 %s15, 2
        // Predicated region
        $region45: #{tpu_custom_call.1} parent=43 // pred_check
          %p316 = pneg %p91
        $region46: #{tpu_custom_call.1} parent=43 // pred_check_branch
          %318 = sbr.rel (%p316) target = $region48
        $region47: #{tpu_custom_call.1} parent=43 // pred_region
          %s319 = sand.u32 %s76, 1
          %s320 = scalar_lea.sflag [#allocation4], %s319
          %s321 = sand.u32 %s76, 1
          %s322 = smul.addr %s321, 8
          %s323 = scalar_lea.vmem [#allocation7], %s322
          %324 = dma.done %s320, 128
        $region48: #{tpu_custom_call.1} parent=43 // pred_fallthru
          _
      $region44: #{tpu_custom_call.1} parent=5 // pred_fallthru
        _
    $region6: #{tpu_custom_call.1} parent=1 // loop_footer
      %s19 = sadd.s32 1, %s15
    $region7: #{tpu_custom_call.1} parent=1 // loop_footer_branch
      %14 = sbr.rel target = $region3
    $region8: #{tpu_custom_call.1} parent=1 // loop_exit
      _
    %325 = vsyncpa [#allocation3], 1
    %s326 = scalar_lea.sflag [#allocation3], 1
    %327 = vsyncpa %s326, 1
    %328 = vsyncpa [#allocation6], 1
    %s329 = scalar_lea.sflag [#allocation6], 1
    %330 = vsyncpa %s329, 1
    %331 = vsyncpa [#allocation4], 1
    %s332 = scalar_lea.sflag [#allocation4], 1
    %333 = vsyncpa %s332, 1

</llo_original>
